<compile_context>
chip_gen: v7x
topology: tpu7x:2x2x1
jax: 0.10.0
libtpu: 0.0.40
codegen_flags: <defaults>
</compile_context>

<pallas_src>
import math
import jax
import jax.numpy as jnp
from jax.experimental import pallas as pl
from jax.experimental.pallas import tpu as pltpu


def _get_pad(size: int, multiple: int):
    new_size = math.ceil(size / multiple) * multiple
    pad = new_size - size
    left = pad // 2
    right = pad - left
    return left, right


def _round_up(x: int, m: int) -> int:
    return ((x + m - 1) // m) * m


def _tpu_budgets():
    """(per-step VMEM footprint budget, vmem_limit_bytes) by TPU generation."""
    kind = ""
    try:
        kind = jax.devices()[0].device_kind.lower()
    except Exception:
        pass
    if "v6" in kind:                     # 128 MiB VMEM: push bigger blocks
        return 32 << 20, 96 << 20
    if "v7" in kind or "7x" in kind:     # 64 MiB VMEM per TC: stay conservative
        return 20 << 20, 32 << 20
    if "v5" in kind:                     # default scoped limit only 16 MiB
        return 16 << 20, 32 << 20
    return 16 << 20, 32 << 20


def _choose_nc_block(nc: int, h: int, w: int, hn: int, wn: int,
                     itemsize: int, budget: int) -> int:
    """Largest N*C slab count per grid step whose true VMEM footprint fits."""
    sub = max(8, 32 // itemsize)         # sublane tile: 8 f32 / 16 bf16 / 32 i8
    in_tile = _round_up(h, sub) * _round_up(w, 128) * itemsize
    out_tile = _round_up(hn, sub) * _round_up(wn, 128) * itemsize
    # Double-buffered input + output blocks, plus ~one block each of live
    # values / zero-strip temporaries per step (no concat temp anymore).
    per_slab = 3 * in_tile + 3 * out_tile
    b = max(1, budget // per_slab)
    # Keep >= 8 grid steps when NC allows (>= 4 per v7x TensorCore) so the
    # pipeline prologue/epilogue DMAs overlap with steady-state work.
    b = min(b, max(1, pl.cdiv(nc, 8)))
    return int(min(b, nc))


def center_padding(x: jax.Array, multiple: int) -> jax.Array:
    """Pads the last two dims of NCHW `x` up to a multiple of `multiple`, centered."""
    N, C, H, W = x.shape
    pad_top, pad_bot = _get_pad(H, multiple)
    pad_left, pad_right = _get_pad(W, multiple)
    Hn = H + pad_top + pad_bot
    Wn = W + pad_left + pad_right

    if Hn == H and Wn == W:              # nothing to pad
        return x

    NC = N * C
    x2 = x.reshape(NC, H, W)             # contiguous view; no data movement

    budget, vmem_limit = _tpu_budgets()
    bnc = _choose_nc_block(NC, H, W, Hn, Wn, x.dtype.itemsize, budget)
    grid = (pl.cdiv(NC, bnc),)

    def kernel(x_ref, o_ref):
        xv = x_ref[...]                  # (bnc, H, W)
        dt = xv.dtype

        # Top / bottom full-width zero strips.
        if pad_top:
            o_ref[:, :pad_top, :] = jnp.zeros((bnc, pad_top, Wn), dt)
        if pad_bot:
            o_ref[:, pad_top + H:, :] = jnp.zeros((bnc, pad_bot, Wn), dt)
        # Left / right zero column strips on the interior rows.
        if pad_left:
            o_ref[:, pad_top:pad_top + H, :pad_left] = jnp.zeros((bnc, H, pad_left), dt)
        if pad_right:
            o_ref[:, pad_top:pad_top + H, pad_left + W:] = jnp.zeros((bnc, H, pad_right), dt)
        # Interior: the input slab, stored exactly once at its centered offset.
        o_ref[:, pad_top:pad_top + H, pad_left:pad_left + W] = xv

    bytes_accessed = NC * (H * W + Hn * Wn) * x.dtype.itemsize

    out = pl.pallas_call(
        kernel,
        out_shape=jax.ShapeDtypeStruct((NC, Hn, Wn), x.dtype),
        grid=grid,
        in_specs=[pl.BlockSpec((bnc, H, W), lambda i: (i, 0, 0))],
        out_specs=pl.BlockSpec((bnc, Hn, Wn), lambda i: (i, 0, 0)),
        compiler_params=pltpu.CompilerParams(
            dimension_semantics=("parallel",),
            vmem_limit_bytes=vmem_limit,
        ),
        cost_estimate=pl.CostEstimate(
            flops=0, transcendentals=0, bytes_accessed=bytes_accessed),
    )(x2)

    return out.reshape(N, C, Hn, Wn)


def _reference(x, multiple):
    _, _, H, W = x.shape
    pt, pb = _get_pad(H, multiple)
    pleft, pright = _get_pad(W, multiple)
    return jnp.pad(x, ((0, 0), (0, 0), (pt, pb), (pleft, pright)))


if __name__ == "__main__":
    key = jax.random.PRNGKey(0)
    k1, k2 = jax.random.split(key)

    # Case 1: canonical small NCHW input, asymmetric pads (2 top/left, 3 bot/right).
    x1 = jax.random.normal(k1, (2, 4, 16, 16), dtype=jnp.float32)
    out1 = jax.block_until_ready(center_padding(x1, 7))
    ref1 = _reference(x1, 7)
    assert out1.shape == ref1.shape, (out1.shape, ref1.shape)
    assert out1.dtype == x1.dtype
    assert jnp.allclose(out1, ref1), "case 1: mismatch vs reference padding"

    # Case 2: NC not divisible by the chosen block (partial last grid step),
    # pad_top == 0 path, odd W.
    x2 = jax.random.normal(k2, (1, 11, 13, 9), dtype=jnp.float32)
    out2 = jax.block_until_ready(center_padding(x2, 14))
    ref2 = _reference(x2, 14)
    assert out2.shape == ref2.shape, (out2.shape, ref2.shape)
    assert jnp.allclose(out2, ref2), "case 2: mismatch vs reference padding"

    print("KERNEL_OK")
</pallas_src>

<mosaic_0001>
module attributes {stable_mosaic.version = 11 : i64} {
  func.func @kernel(%arg0: i32, %arg1: memref<1x16x16xf32, #tpu.memory_space<vmem>>, %arg2: memref<1x21x21xf32, #tpu.memory_space<vmem>>) attributes {dimension_semantics = [#tpu.dimension_semantics<parallel>], iteration_bounds = array<i64: 8>, scalar_prefetch = 0 : i64, scratch_operands = 0 : i64, tpu.core_type = #tpu.core_type<tc>, window_params = [{transform_indices = @transform_0, window_bounds = array<i64: 1, 16, 16>}, {transform_indices = @transform_1, window_bounds = array<i64: 1, 21, 21>}]} {
    %c0 = arith.constant 0 : index
    %c0_0 = arith.constant 0 : index
    %c0_1 = arith.constant 0 : index
    %0 = vector.load %arg1[%c0, %c0_0, %c0_1] : memref<1x16x16xf32, #tpu.memory_space<vmem>>, vector<1x16x16xf32>
    %cst = arith.constant 0.000000e+00 : f32
    %1 = vector.broadcast %cst : f32 to vector<1x2x21xf32>
    %c0_2 = arith.constant 0 : index
    %c0_3 = arith.constant 0 : index
    %c0_4 = arith.constant 0 : index
    %2 = vector.load %arg2[%c0_2, %c0_3, %c0_4] : memref<1x21x21xf32, #tpu.memory_space<vmem>>, vector<1x2x21xf32>
    tpu.vector_store %arg2[%c0_2, %c0_3, %c0_4], %1 {strides = array<i32>} : memref<1x21x21xf32, #tpu.memory_space<vmem>>, vector<1x2x21xf32>,
    %cst_5 = arith.constant 0.000000e+00 : f32
    %3 = vector.broadcast %cst_5 : f32 to vector<1x3x21xf32>
    %c0_6 = arith.constant 0 : index
    %c18 = arith.constant 18 : index
    %c0_7 = arith.constant 0 : index
    %4 = vector.load %arg2[%c0_6, %c18, %c0_7] : memref<1x21x21xf32, #tpu.memory_space<vmem>>, vector<1x3x21xf32>
    tpu.vector_store %arg2[%c0_6, %c18, %c0_7], %3 {strides = array<i32>} : memref<1x21x21xf32, #tpu.memory_space<vmem>>, vector<1x3x21xf32>,
    %cst_8 = arith.constant 0.000000e+00 : f32
    %5 = vector.broadcast %cst_8 : f32 to vector<1x16x2xf32>
    %c0_9 = arith.constant 0 : index
    %c2 = arith.constant 2 : index
    %c0_10 = arith.constant 0 : index
    %6 = vector.load %arg2[%c0_9, %c2, %c0_10] : memref<1x21x21xf32, #tpu.memory_space<vmem>>, vector<1x16x2xf32>
    tpu.vector_store %arg2[%c0_9, %c2, %c0_10], %5 {strides = array<i32>} : memref<1x21x21xf32, #tpu.memory_space<vmem>>, vector<1x16x2xf32>,
    %cst_11 = arith.constant 0.000000e+00 : f32
    %7 = vector.broadcast %cst_11 : f32 to vector<1x16x3xf32>
    %c0_12 = arith.constant 0 : index
    %c2_13 = arith.constant 2 : index
    %c18_14 = arith.constant 18 : index
    %8 = vector.load %arg2[%c0_12, %c2_13, %c18_14] : memref<1x21x21xf32, #tpu.memory_space<vmem>>, vector<1x16x3xf32>
    tpu.vector_store %arg2[%c0_12, %c2_13, %c18_14], %7 {strides = array<i32>} : memref<1x21x21xf32, #tpu.memory_space<vmem>>, vector<1x16x3xf32>,
    %c0_15 = arith.constant 0 : index
    %c2_16 = arith.constant 2 : index
    %c2_17 = arith.constant 2 : index
    %9 = vector.load %arg2[%c0_15, %c2_16, %c2_17] : memref<1x21x21xf32, #tpu.memory_space<vmem>>, vector<1x16x16xf32>
    tpu.vector_store %arg2[%c0_15, %c2_16, %c2_17], %0 {strides = array<i32>} : memref<1x21x21xf32, #tpu.memory_space<vmem>>, vector<1x16x16xf32>,
    return
  }
  func.func @transform_0(%arg0: i32) -> (i32, i32, i32) {
    %c0_i32 = arith.constant 0 : i32
    %c0_i32_0 = arith.constant 0 : i32
    %c0_i32_1 = arith.constant 0 : i32
    return %arg0, %c0_i32, %c0_i32_0 : i32, i32, i32
  }
  func.func @transform_1(%arg0: i32) -> (i32, i32, i32) {
    %c0_i32 = arith.constant 0 : i32
    %c0_i32_0 = arith.constant 0 : i32
    %c0_i32_1 = arith.constant 0 : i32
    return %arg0, %c0_i32, %c0_i32_0 : i32, i32, i32
  }
}

</mosaic_0001>

<llo_original>
// kernel: tpu_custom_call.1
$region0: #{tpu_custom_call.1}
  #allocation0 [shape = 'u32[]', space=smem, size = 0x4, offset = 0x4, fixed_abs, tag = 'smem constant byte address 0x4 - core index']
  #allocation1 [shape = 'u32[144,128]{1,0:T(1,128)}', space=vmem, size = 0x12000, scoped, tag = 'internal scratch']
  %s0 = inlined_call_operand.hbm [shape: f32[8,16,16], index: 0, kind: input, shape index: {}]
  %s1 = inlined_call_operand.vmem [shape: f32[8,21,21], index: 1, kind: output, shape index: {}]
  %s2 = sld [smem:[#allocation0]]
  $region41: #{tpu_custom_call.1} parent=0
    _
  %s4 = ssub.s32 1, %s2
  %s5 = scalar_select 0, %s4, %s2
  $region1: #{tpu_custom_call.1} parent=0
    #allocation2 [shape = 'u8[16384]{0}', space=vmem, size = 0x4000, scoped, tag = 'input window, operand 0']
    #allocation3 [shape = 's32[2]{0}', space=sflag, size = 0x8, scoped, tag = 'scoped memory for tpu_custom_call.1']
    %6 = vsyncpa [#allocation3], 0
    %s7 = scalar_lea.sflag [#allocation3], 1
    %8 = vsyncpa %s7, 0
    loop: start=0, step=1, limit=10
    $region2: #{tpu_custom_call.1} parent=1 // loop_pre_header
      _
    $region3: #{tpu_custom_call.1} parent=1 // loop_header
      %s10 = sphi 0, %s14
      %p11 = scmp.ge.s32.totalorder %s10, 10
      %s20 = sphi 0, %s22
      %s23 = sphi 0, %s20
      %s24 = sphi 0, %s23
      %s40 = sphi 0, %s24
      %s46 = sphi 0, %s48
      %s49 = sphi 0, %s46
      %s50 = sphi 0, %s49
      %s66 = sphi 0, %s50
    $region4: #{tpu_custom_call.1} parent=1 // loop_header_branch
      %13 = sbr.rel (%p11) target = $region8
    $region5: #{tpu_custom_call.1} parent=1 // loop_body
      %s15 = ssub.s32 %s10, 1
      %s16 = ssub.s32 %s10, 2
      %s17 = sadd.s32 %s10, 1
      %s18 = ssub.s32 %s10, %s17
      %p19 = scmp.eq.s32.totalorder %s18, 0
      %s21 = sadd.s32 %s20, 1
      %s22 = scalar_select %p19, %s20, %s21
      %p25 = pneg %p19
      %p26 = scmp.eq.s32.totalorder %s10, 7
      %p27 = por %p25, %p26
      %p28 = scmp.ne.s32.totalorder %s20, %s23
      %p29 = scmp.eq.s32.totalorder %s10, 0
      %p30 = por %p28, %p29
      %p31 = scmp.ne.s32.totalorder %s20, %s23
      %p32 = scmp.eq.s32.totalorder %s15, 7
      %p33 = por %p31, %p32
      %p34 = scmp.ne.s32.totalorder %s23, %s24
      %p35 = scmp.eq.s32.totalorder %s15, 0
      %p36 = por %p34, %p35
      %p37 = scmp.ne.s32.totalorder %s23, %s24
      %p38 = scmp.eq.s32.totalorder %s16, 7
      %p39 = por %p37, %p38
      %p41 = scmp.ne.s32.totalorder %s24, %s40
      %p42 = scmp.eq.s32.totalorder %s16, 0
      %p43 = por %p41, %p42
      %s44 = ssub.s32 %s10, %s17
      %p45 = scmp.eq.s32.totalorder %s44, 0
      %s47 = sadd.s32 %s46, 1
      %s48 = scalar_select %p45, %s46, %s47
      %p51 = pneg %p45
      %p52 = scmp.eq.s32.totalorder %s10, 7
      %p53 = por %p51, %p52
      %p54 = scmp.ne.s32.totalorder %s46, %s49
      %p55 = scmp.eq.s32.totalorder %s10, 0
      %p56 = por %p54, %p55
      %p57 = scmp.ne.s32.totalorder %s46, %s49
      %p58 = scmp.eq.s32.totalorder %s15, 7
      %p59 = por %p57, %p58
      %p60 = scmp.ne.s32.totalorder %s49, %s50
      %p61 = scmp.eq.s32.totalorder %s15, 0
      %p62 = por %p60, %p61
      %p63 = scmp.ne.s32.totalorder %s49, %s50
      %p64 = scmp.eq.s32.totalorder %s16, 7
      %p65 = por %p63, %p64
      %p67 = scmp.ne.s32.totalorder %s50, %s66
      %p68 = scmp.eq.s32.totalorder %s16, 0
      %p69 = por %p67, %p68
      %p70 = scmp.le.s32.totalorder 1, %s10
      %p71 = scmp.lt.s32.totalorder %s10, 9
      %p72 = pnand %p70, %p71
      %p73 = pneg %p72
      // Predicated region
      $region9: #{tpu_custom_call.1} parent=5 // pred_check
        _
      $region10: #{tpu_custom_call.1} parent=5 // pred_check_branch
        %75 = sbr.rel (%p72) target = $region12
      $region11: #{tpu_custom_call.1} parent=5 // pred_region
        %s76 = ssub.s32 %s10, 1
      $region12: #{tpu_custom_call.1} parent=5 // pred_fallthru
        _
      %p77 = scmp.lt.s32.totalorder %s10, 8
      // Predicated region
      $region13: #{tpu_custom_call.1} parent=5 // pred_check
        %p78 = pneg %p77
      $region14: #{tpu_custom_call.1} parent=5 // pred_check_branch
        %80 = sbr.rel (%p78) target = $region16
      $region15: #{tpu_custom_call.1} parent=5 // pred_region
        // Predicated region
        $region17: #{tpu_custom_call.1} parent=15 // pred_check
          %p81 = pneg %p30
        $region18: #{tpu_custom_call.1} parent=15 // pred_check_branch
          %83 = sbr.rel (%p81) target = $region20
        $region19: #{tpu_custom_call.1} parent=15 // pred_region
          %s84 = sand.u32 %s20, 1
          %s85 = scalar_lea.sflag [#allocation3], %s84
          %s86 = sand.u32 %s20, 1
          %s87 = smul.addr %s86, 16
          %s88 = scalar_lea.vmem [#allocation2], %s87
          %s90 = ssub.s32 256, 256
          %91 = vsyncadd %s85, %s90
          %s92 = smul.addr %s10, 2
          %s93 = smul.addr %s92, 128
          %s94 = scalar_lea.hbm %s0, %s93
          %s95 = sshll.u32 %s88, 4
          %s96 = int_to_ptr.vmem [resolvable:$true] %s95
          %101 = dma.hbm_to_vmem [thread:$0]  %s94, 256, %s96, %s85, 128, 128, 8
        $region20: #{tpu_custom_call.1} parent=15 // pred_fallthru
          _
      $region16: #{tpu_custom_call.1} parent=5 // pred_fallthru
        _
      %p102 = scmp.le.s32.totalorder 1, %s10
      %p103 = scmp.lt.s32.totalorder %s10, 9
      %p104 = pnand %p102, %p103
      %p105 = pneg %p104
      // Predicated region
      $region21: #{tpu_custom_call.1} parent=5 // pred_check
        _
      $region22: #{tpu_custom_call.1} parent=5 // pred_check_branch
        %107 = sbr.rel (%p104) target = $region24
      $region23: #{tpu_custom_call.1} parent=5 // pred_region
        %s108 = ssub.s32 %s10, 1
        %s109 = sand.u32 %s23, 1
        %s110 = scalar_lea.sflag [#allocation3], %s109
        %s111 = sand.u32 %s23, 1
        %s112 = smul.addr %s111, 16
        %s113 = scalar_lea.vmem [#allocation2], %s112
        // Predicated region
        $region25: #{tpu_custom_call.1} parent=23 // pred_check
          %p114 = pneg %p36
        $region26: #{tpu_custom_call.1} parent=23 // pred_check_branch
          %116 = sbr.rel (%p114) target = $region28
        $region27: #{tpu_custom_call.1} parent=23 // pred_region
          %117 = dma.done %s110, 256
        $region28: #{tpu_custom_call.1} parent=23 // pred_fallthru
          _
        %s118 = sand.u32 %s23, 1
        %s119 = scalar_lea.sflag [#allocation3], %s118
        %s120 = sand.u32 %s23, 1
        %s121 = smul.addr %s120, 16
        %s122 = scalar_lea.vmem [#allocation2], %s121
        %p123 = pneg %p36
        %p124 = pneg %p33
        %p125 = pneg %p62
        %p126 = pneg %p59
        %p127 = scmp.lt.s32.totalorder %s15, 7
        %s128 = scalar_select %p127, %s15, 7
        %s129 = smul.addr %s128, 3
        %s130 = smul.addr %s129, 8
        %s131 = scalar_lea.vmem %s1, %s130
        %p132 = scmp.lt.s32.totalorder %s15, 7
        %s133 = scalar_select %p132, %s15, 7
        %s134 = smul.addr %s133, 3
        %s135 = smul.addr %s134, 8
        %s136 = scalar_lea.vmem %s1, %s135
        %v137 = vld [vmem:[%s113] sm:$0xff]
        %v138 = vld [vmem:[%s113 + $0x8] sm:$0xff]
        %vm139 = vcmask 164864
        %140 = vst.msk [vmem:[%s136] sm:$0x3] %vm139, 0.0
        %vm141 = vcmask 165888
        %142 = vst.msk [vmem:[%s136 + $0x12] sm:$0x7] %vm141, 0.0
        %vm143 = vcmask 15360
        %144 = vst.msk [vmem:[%s136 + $0x2] sm:$0xff] %vm143, 0.0
        %145 = vst.msk [vmem:[%s136 + $0xa] sm:$0xff] %vm143, 0.0
        %vm146 = vcmask 171152
        %147 = vst.msk [vmem:[%s136 + $0x2] sm:$0xff] %vm146, 0.0
        %148 = vst.msk [vmem:[%s136 + $0xa] sm:$0xff] %vm146, 0.0
        %151 = vrot.lane.b32.xlu0 %v137, 2
        %v152 = vpop.permute.xlu0 %151
        %153 = vrot.lane.b32.xlu0 %v138, 2
        %v154 = vpop.permute.xlu0 %153
        %vm157 = vcmask 146448
        %158 = vst.msk [vmem:[%s136 + $0x2] sm:$0xff] %vm157, %v152
        %159 = vst.msk [vmem:[%s136 + $0xa] sm:$0xff] %vm157, %v154
        %p160 = scmp.lt.s32.totalorder %s15, 7
        %s161 = scalar_select %p160, %s15, 7
        %s162 = smul.addr %s161, 3
        %s163 = smul.addr %s162, 8
        %s164 = scalar_lea.vmem %s1, %s163
        // Predicated region
        $region29: #{tpu_custom_call.1} parent=23 // pred_check
          %p165 = pneg %p59
        $region30: #{tpu_custom_call.1} parent=23 // pred_check_branch
          %167 = sbr.rel (%p165) target = $region32
        $region31: #{tpu_custom_call.1} parent=23 // pred_region
          _
        $region32: #{tpu_custom_call.1} parent=23 // pred_fallthru
          _
      $region24: #{tpu_custom_call.1} parent=5 // pred_fallthru
        _
      %p168 = scmp.le.s32.totalorder 2, %s10
      // Predicated region
      $region33: #{tpu_custom_call.1} parent=5 // pred_check
        %p169 = pneg %p168
      $region34: #{tpu_custom_call.1} parent=5 // pred_check_branch
        %171 = sbr.rel (%p169) target = $region36
      $region35: #{tpu_custom_call.1} parent=5 // pred_region
        %s172 = ssub.s32 %s10, 2
        // Predicated region
        $region37: #{tpu_custom_call.1} parent=35 // pred_check
          %p173 = pneg %p65
        $region38: #{tpu_custom_call.1} parent=35 // pred_check_branch
          %175 = sbr.rel (%p173) target = $region40
        $region39: #{tpu_custom_call.1} parent=35 // pred_region
          %p176 = scmp.lt.s32.totalorder %s16, 7
          %s177 = scalar_select %p176, %s16, 7
          %s178 = smul.addr %s177, 3
          %s179 = smul.addr %s178, 8
          %s180 = scalar_lea.vmem %s1, %s179
        $region40: #{tpu_custom_call.1} parent=35 // pred_fallthru
          _
      $region36: #{tpu_custom_call.1} parent=5 // pred_fallthru
        _
    $region6: #{tpu_custom_call.1} parent=1 // loop_footer
      %s14 = sadd.s32 1, %s10
    $region7: #{tpu_custom_call.1} parent=1 // loop_footer_branch
      %9 = sbr.rel target = $region3
    $region8: #{tpu_custom_call.1} parent=1 // loop_exit
      _
    %181 = vsyncpa [#allocation3], 1
    %s182 = scalar_lea.sflag [#allocation3], 1
    %183 = vsyncpa %s182, 1

</llo_original>
